<compile_context>
chip_gen: v7x
topology: tpu7x:2x2x1
jax: 0.10.0
libtpu: 0.0.40
codegen_flags: <defaults>
</compile_context>

<pallas_src>
import numpy as np
import jax
import jax.numpy as jnp
from jax.experimental import pallas as pl
from jax.experimental.pallas import tpu as pltpu

EPS = 1e-5
DROPOUT_RATE = 0.3
LANE = 128
# keep element iff uint32 random bits < KEEP_THRESHOLD  => P(keep) = 1 - rate
KEEP_THRESHOLD = np.uint32(min(int(round((1.0 - DROPOUT_RATE) * 2.0**32)),
                               2**32 - 1))


def _bn_dropout_kernel(x_ref, gamma_ref, beta_ref, bits_ref, o_ref):
    # x_ref/bits_ref/o_ref: (N, TF); gamma_ref/beta_ref: (1, TF). All per-feature
    # stats are self-contained in a feature tile, so no cross-tile accumulation.
    x = x_ref[...]                                        # (N, TF) f32
    n = x.shape[0]
    inv_n = jnp.float32(1.0 / n)

    # ---- BatchNorm (train): one-pass stats, folded into scale/bias ----
    mean = jnp.sum(x, axis=0, keepdims=True) * inv_n            # (1, TF)
    mean_sq = jnp.sum(x * x, axis=0, keepdims=True) * inv_n     # (1, TF)
    var = jnp.maximum(mean_sq - mean * mean, 0.0)               # biased, like np.var
    inv_std = jax.lax.rsqrt(var + EPS)                          # EUP, 1 per feature
    scale = gamma_ref[...] * inv_std                            # (1, TF)
    bias = beta_ref[...] - mean * scale                         # (1, TF)

    # ---- Dropout (train): integer-domain threshold + select, fused with the
    #      single elementwise pass over the (N, TF) slab ----
    keep = bits_ref[...] < jnp.uint32(KEEP_THRESHOLD)
    o_ref[...] = jnp.where(keep, x * scale + bias, 0.0)


def sequential_forward(x, gamma, beta, key):
    """x: (N, F, 1) f32; gamma/beta: (F,) f32; key: jax PRNG key.

    Returns (N, F, 1) f32 = Dropout(BatchNorm(x)) in train mode.
    """
    N, F, _ = x.shape

    # Feature tile: multiple of 128 lanes, capped at 512 (fits comfortably in
    # v7x's 64 MiB VMEM with double-buffering even for large N; raise
    # vmem_limit_bytes if you grow it).
    f_rounded = ((F + LANE - 1) // LANE) * LANE
    TF = min(512, f_rounded)
    F_pad = ((F + TF - 1) // TF) * TF
    grid = (F_pad // TF,)

    # ---- wrapper glue: squeeze trailing dim, pad feature axis to lane-dense ----
    x2 = x[..., 0]                                        # (N, F)
    if F_pad != F:
        x2 = jnp.pad(x2, ((0, 0), (0, F_pad - F)))
        gamma_p = jnp.pad(gamma, (0, F_pad - F))
        beta_p = jnp.pad(beta, (0, F_pad - F))
    else:
        gamma_p, beta_p = gamma, beta
    gamma2 = gamma_p.reshape(1, F_pad).astype(jnp.float32)
    beta2 = beta_p.reshape(1, F_pad).astype(jnp.float32)

    # Raw dropout entropy (per element, independent across tiles/cores).
    bits = jax.random.bits(key, (N, F_pad), dtype=jnp.uint32)

    out2 = pl.pallas_call(
        _bn_dropout_kernel,
        out_shape=jax.ShapeDtypeStruct((N, F_pad), jnp.float32),
        grid=grid,
        in_specs=[
            pl.BlockSpec((N, TF), lambda j: (0, j)),      # x
            pl.BlockSpec((1, TF), lambda j: (0, j)),      # gamma
            pl.BlockSpec((1, TF), lambda j: (0, j)),      # beta
            pl.BlockSpec((N, TF), lambda j: (0, j)),      # dropout bits
        ],
        out_specs=pl.BlockSpec((N, TF), lambda j: (0, j)),
        compiler_params=pltpu.CompilerParams(
            dimension_semantics=("parallel",)),
    )(x2, gamma2, beta2, bits)

    return out2[:, :F, None]                              # (N, F, 1) -- glue


if __name__ == "__main__":
    N, F = 8, 32
    key = jax.random.PRNGKey(0)
    kx, kg, kb, kd = jax.random.split(key, 4)

    # Module __init__ zero-inits gamma/beta (which would make the output
    # identically zero); use deterministic random values so the kernel does
    # real work.
    x = jax.random.normal(kx, (N, F, 1), dtype=jnp.float32)
    gamma = jax.random.normal(kg, (F,), dtype=jnp.float32)
    beta = jax.random.normal(kb, (F,), dtype=jnp.float32)

    out = sequential_forward(x, gamma, beta, key=kd)
    out = jax.block_until_ready(out)

    # Sanity check: every output element must equal either 0 (dropped) or the
    # batchnorm output (kept).
    xn = np.asarray(x)[..., 0]
    mean = xn.mean(axis=0)
    var = xn.var(axis=0)
    bn_ref = np.asarray(gamma) * (xn - mean) / np.sqrt(var + EPS) + np.asarray(beta)
    o = np.asarray(out)[..., 0]
    ok = np.all(
        np.isclose(o, bn_ref, rtol=1e-4, atol=1e-4) | np.isclose(o, 0.0, atol=1e-6)
    )
    assert out.shape == (N, F, 1)
    assert ok, "kernel output does not match batchnorm reference (modulo dropout mask)"

    print("KERNEL_OK")
</pallas_src>

<mosaic_0001>
module attributes {stable_mosaic.version = 11 : i64} {
  func.func @_bn_dropout_kernel(%arg0: i32, %arg1: memref<8x128xf32, #tpu.memory_space<vmem>>, %arg2: memref<1x128xf32, #tpu.memory_space<vmem>>, %arg3: memref<1x128xf32, #tpu.memory_space<vmem>>, %arg4: memref<8x128xi32, #tpu.memory_space<vmem>>, %arg5: memref<8x128xf32, #tpu.memory_space<vmem>>) attributes {dimension_semantics = [#tpu.dimension_semantics<parallel>], iteration_bounds = array<i64: 1>, scalar_prefetch = 0 : i64, scratch_operands = 0 : i64, tpu.core_type = #tpu.core_type<tc>, window_params = [{transform_indices = @transform_0, window_bounds = array<i64: 8, 128>}, {transform_indices = @transform_1, window_bounds = array<i64: 1, 128>}, {transform_indices = @transform_2, window_bounds = array<i64: 1, 128>}, {transform_indices = @transform_3, window_bounds = array<i64: 8, 128>}, {transform_indices = @transform_4, window_bounds = array<i64: 8, 128>}]} {
    %c0 = arith.constant 0 : index
    %c0_0 = arith.constant 0 : index
    %0 = vector.load %arg1[%c0, %c0_0] : memref<8x128xf32, #tpu.memory_space<vmem>>, vector<8x128xf32>
    %cst = arith.constant dense<0.000000e+00> : vector<128xf32>
    %1 = vector.multi_reduction <add>, %0, %cst [0] : vector<8x128xf32> to vector<128xf32>
    %2 = vector.shape_cast %1 : vector<128xf32> to vector<1x128xf32>
    %cst_1 = arith.constant 1.250000e-01 : f32
    %3 = vector.broadcast %cst_1 : f32 to vector<1x128xf32>
    %4 = arith.mulf %2, %3 : vector<1x128xf32>
    %5 = arith.mulf %0, %0 : vector<8x128xf32>
    %cst_2 = arith.constant dense<0.000000e+00> : vector<128xf32>
    %6 = vector.multi_reduction <add>, %5, %cst_2 [0] : vector<8x128xf32> to vector<128xf32>
    %7 = vector.shape_cast %6 : vector<128xf32> to vector<1x128xf32>
    %cst_3 = arith.constant 1.250000e-01 : f32
    %8 = vector.broadcast %cst_3 : f32 to vector<1x128xf32>
    %9 = arith.mulf %7, %8 : vector<1x128xf32>
    %10 = arith.mulf %4, %4 : vector<1x128xf32>
    %11 = arith.subf %9, %10 : vector<1x128xf32>
    %cst_4 = arith.constant 0.000000e+00 : f32
    %12 = vector.broadcast %cst_4 : f32 to vector<1x128xf32>
    %13 = arith.maximumf %11, %12 : vector<1x128xf32>
    %cst_5 = arith.constant 9.99999974E-6 : f32
    %14 = vector.broadcast %cst_5 : f32 to vector<1x128xf32>
    %15 = arith.addf %13, %14 : vector<1x128xf32>
    %16 = math.rsqrt %15 : vector<1x128xf32>
    %c0_6 = arith.constant 0 : index
    %c0_7 = arith.constant 0 : index
    %17 = vector.load %arg2[%c0_6, %c0_7] : memref<1x128xf32, #tpu.memory_space<vmem>>, vector<1x128xf32>
    %18 = arith.mulf %17, %16 : vector<1x128xf32>
    %c0_8 = arith.constant 0 : index
    %c0_9 = arith.constant 0 : index
    %19 = vector.load %arg3[%c0_8, %c0_9] : memref<1x128xf32, #tpu.memory_space<vmem>>, vector<1x128xf32>
    %20 = arith.mulf %4, %18 : vector<1x128xf32>
    %21 = arith.subf %19, %20 : vector<1x128xf32>
    %c0_10 = arith.constant 0 : index
    %c0_11 = arith.constant 0 : index
    %22 = vector.load %arg4[%c0_10, %c0_11] : memref<8x128xi32, #tpu.memory_space<vmem>>, vector<8x128xi32>
    %c-1288490189_i32 = arith.constant -1288490189 : i32
    %23 = vector.broadcast %c-1288490189_i32 : i32 to vector<8x128xi32>
    %24 = arith.cmpi ult, %22, %23 : vector<8x128xi32>
    %25 = vector.broadcast %18 : vector<1x128xf32> to vector<8x128xf32>
    %26 = arith.mulf %0, %25 : vector<8x128xf32>
    %27 = vector.broadcast %21 : vector<1x128xf32> to vector<8x128xf32>
    %28 = arith.addf %26, %27 : vector<8x128xf32>
    %cst_12 = arith.constant 0.000000e+00 : f32
    %29 = vector.broadcast %cst_12 : f32 to vector<8x128xf32>
    %30 = arith.select %24, %28, %29 : vector<8x128xi1>, vector<8x128xf32>
    %c0_13 = arith.constant 0 : index
    %c0_14 = arith.constant 0 : index
    %31 = vector.load %arg5[%c0_13, %c0_14] : memref<8x128xf32, #tpu.memory_space<vmem>>, vector<8x128xf32>
    tpu.vector_store %arg5[%c0_13, %c0_14], %30 {strides = array<i32>} : memref<8x128xf32, #tpu.memory_space<vmem>>, vector<8x128xf32>,
    return
  }
  func.func @transform_0(%arg0: i32) -> (i32, i32) {
    %c0_i32 = arith.constant 0 : i32
    %c0_i32_0 = arith.constant 0 : i32
    return %c0_i32, %arg0 : i32, i32
  }
  func.func @transform_1(%arg0: i32) -> (i32, i32) {
    %c0_i32 = arith.constant 0 : i32
    %c0_i32_0 = arith.constant 0 : i32
    return %c0_i32, %arg0 : i32, i32
  }
  func.func @transform_2(%arg0: i32) -> (i32, i32) {
    %c0_i32 = arith.constant 0 : i32
    %c0_i32_0 = arith.constant 0 : i32
    return %c0_i32, %arg0 : i32, i32
  }
  func.func @transform_3(%arg0: i32) -> (i32, i32) {
    %c0_i32 = arith.constant 0 : i32
    %c0_i32_0 = arith.constant 0 : i32
    return %c0_i32, %arg0 : i32, i32
  }
  func.func @transform_4(%arg0: i32) -> (i32, i32) {
    %c0_i32 = arith.constant 0 : i32
    %c0_i32_0 = arith.constant 0 : i32
    return %c0_i32, %arg0 : i32, i32
  }
}

</mosaic_0001>

<llo_original>
// kernel: tpu_custom_call.1
$region0: #{tpu_custom_call.1}
  #allocation0 [shape = 'u32[]', space=smem, size = 0x4, offset = 0x4, fixed_abs, tag = 'smem constant byte address 0x4 - core index']
  #allocation1 [shape = 'u32[144,128]{1,0:T(1,128)}', space=vmem, size = 0x12000, scoped, tag = 'internal scratch']
  %s0 = inlined_call_operand.hbm [shape: f32[8,128], index: 0, kind: input, shape index: {}]
  %s1 = inlined_call_operand.vmem [shape: f32[1,128], index: 1, kind: input, shape index: {}]
  %s2 = inlined_call_operand.vmem [shape: f32[1,128], index: 2, kind: input, shape index: {}]
  %s3 = inlined_call_operand.vmem [shape: u32[8,128], index: 3, kind: input, shape index: {}]
  %s4 = inlined_call_operand.hbm [shape: f32[8,128], index: 4, kind: output, shape index: {}]
  %s5 = sld [smem:[#allocation0]]
  $region30: #{tpu_custom_call.1} parent=0
    _
  %s7 = ssub.s32 1, %s5
  %s8 = scalar_select 0, %s7, %s5
  $region1: #{tpu_custom_call.1} parent=0
    #allocation2 [shape = 'u8[4096]{0}', space=vmem, size = 0x1000, scoped, tag = 'input window, operand 0, single buffered']
    #allocation3 [shape = 's32[1]{0}', space=sflag, size = 0x4, scoped, tag = 'scoped memory for tpu_custom_call.1']
    #allocation4 [shape = 's32[1]{0}', space=sflag, size = 0x4, scoped, tag = 'scoped memory for tpu_custom_call.1']
    #allocation5 [shape = 'u8[4096]{0}', space=vmem, size = 0x1000, scoped, tag = 'output window, operand 0, single buffered']
    %9 = vsyncpa [#allocation3], 0
    %10 = vsyncpa [#allocation4], 0
    // Predicated region
    $region2: #{tpu_custom_call.1} parent=1 // pred_check
      _
    $region3: #{tpu_custom_call.1} parent=1 // pred_check_branch
      %12 = sbr.rel (0) target = $region5
    $region4: #{tpu_custom_call.1} parent=1 // pred_region
      %s14 = ssub.s32 128, 128
      %15 = vsyncadd [#allocation3], %s14
      %s17 = sshll.u32 [#allocation2], 4
      %s18 = int_to_ptr.vmem [resolvable:$true] %s17
      %20 = dma.hbm_to_vmem [thread:$0]  %s0, 128, %s18, [#allocation3]
    $region5: #{tpu_custom_call.1} parent=1 // pred_fallthru
      _
    // Predicated region
    $region6: #{tpu_custom_call.1} parent=1 // pred_check
      _
    $region7: #{tpu_custom_call.1} parent=1 // pred_check_branch
      %22 = sbr.rel (0) target = $region9
    $region8: #{tpu_custom_call.1} parent=1 // pred_region
      _
    $region9: #{tpu_custom_call.1} parent=1 // pred_fallthru
      _
    // Predicated region
    $region10: #{tpu_custom_call.1} parent=1 // pred_check
      _
    $region11: #{tpu_custom_call.1} parent=1 // pred_check_branch
      %24 = sbr.rel (0) target = $region13
    $region12: #{tpu_custom_call.1} parent=1 // pred_region
      _
    $region13: #{tpu_custom_call.1} parent=1 // pred_fallthru
      _
    // Predicated region
    $region14: #{tpu_custom_call.1} parent=1 // pred_check
      _
    $region15: #{tpu_custom_call.1} parent=1 // pred_check_branch
      %26 = sbr.rel (0) target = $region17
    $region16: #{tpu_custom_call.1} parent=1 // pred_region
      _
    $region17: #{tpu_custom_call.1} parent=1 // pred_fallthru
      _
    // Predicated region
    $region18: #{tpu_custom_call.1} parent=1 // pred_check
      _
    $region19: #{tpu_custom_call.1} parent=1 // pred_check_branch
      %28 = sbr.rel (0) target = $region21
    $region20: #{tpu_custom_call.1} parent=1 // pred_region
      %29 = dma.done [#allocation3], 128
    $region21: #{tpu_custom_call.1} parent=1 // pred_fallthru
      _
    %v30 = vld [vmem:[#allocation2] sm:$0xff]
    %v31 = vrot.slane %v30, 4
    %v32 = vadd.f32 %v30, %v31
    %v33 = vrot.slane %v32, 2
    %v34 = vadd.f32 %v32, %v33
    %v35 = vrot.slane %v34, 1
    %v36 = vadd.f32 %v34, %v35
    %v37 = vmul.f32 %v36, 0.125
    %v38 = vmul.f32 %v30, %v30
    %v39 = vrot.slane %v38, 4
    %v40 = vadd.f32 %v38, %v39
    %v41 = vrot.slane %v40, 2
    %v42 = vadd.f32 %v40, %v41
    %v43 = vrot.slane %v42, 1
    %v44 = vadd.f32 %v42, %v43
    %v45 = vmul.f32 %v44, 0.125
    %v46 = vmul.f32 %v37, %v37
    %v47 = vsub.f32 %v45, %v46
    %v48 = vmax.f32 %v47, 0.0
    %v49 = vadd.f32 %v48, 1e-05
    %v50 = vrsqrt.pop %v49
    %v51 = vld [vmem:[%s1] sm:$0x1]
    %v52 = vmul.f32 %v51, %v50
    %v53 = vld [vmem:[%s2] sm:$0x1]
    %v54 = vmul.f32 %v37, %v52
    %v55 = vsub.f32 %v53, %v54
    %v56 = vld [vmem:[%s3] sm:$0xff]
    %vm57 = vcmp.lt.u32.totalorder %v56, 3006477107
    %v59 = vlaneseq
    %v60 = vshrl.u32 %v59, 7
    %v61 = vsub.s32 0, %v60
    %v62 = vrot.slane %v52, %v61
    %v64 = vmul.f32 %v30, %v62
    %v66 = vlaneseq
    %v67 = vshrl.u32 %v66, 7
    %v68 = vsub.s32 0, %v67
    %v69 = vrot.slane %v55, %v68
    %v71 = vadd.f32 %v64, %v69
    %v72 = vsel %vm57, %v71, 0.0
    %73 = vst [vmem:[#allocation5] sm:$0xff] %v72
    // Predicated region
    $region22: #{tpu_custom_call.1} parent=1 // pred_check
      _
    $region23: #{tpu_custom_call.1} parent=1 // pred_check_branch
      %75 = sbr.rel (0) target = $region25
    $region24: #{tpu_custom_call.1} parent=1 // pred_region
      %s77 = ssub.s32 128, 128
      %78 = vsyncadd [#allocation4], %s77
      %s80 = sshll.u32 [#allocation5], 4
      %s81 = int_to_ptr.vmem [resolvable:$true] %s80
      %83 = dma.vmem_to_hbm [thread:$0]  %s81, 128, %s4, [#allocation4]
    $region25: #{tpu_custom_call.1} parent=1 // pred_fallthru
      _
    // Predicated region
    $region26: #{tpu_custom_call.1} parent=1 // pred_check
      _
    $region27: #{tpu_custom_call.1} parent=1 // pred_check_branch
      %85 = sbr.rel (0) target = $region29
    $region28: #{tpu_custom_call.1} parent=1 // pred_region
      %86 = dma.done [#allocation4], 128
    $region29: #{tpu_custom_call.1} parent=1 // pred_fallthru
      _
    %87 = vsyncpa [#allocation3], 1
    %88 = vsyncpa [#allocation4], 1

</llo_original>
